<compile_context>
chip_gen: v6e
topology: v6e:2x2x1
jax: 0.10.0
libtpu: 0.0.40
codegen_flags: <defaults>
</compile_context>

<pallas_src>
import functools

import jax
import jax.numpy as jnp
from jax.experimental import pallas as pl
from jax.experimental.pallas import tpu as pltpu


def _blur3x3_kernel(x_ref, o_ref, *, H, W):
    # x_ref / o_ref: (B, H*W) blocks; each row is one flattened image plane.
    x = x_ref[...].astype(jnp.float32)
    Bp, HW = x.shape

    idx = jax.lax.broadcasted_iota(jnp.int32, (Bp, HW), 1)   # flat pixel index
    col = idx % W                                            # static W -> cheap

    # Horizontal [1, 2, 1] pass: neighbors are +-1 along the flattened lane axis.
    # Rolls are circular; mask the wrapped element so row edges see the zero halo.
    left = jnp.where(col != 0, pltpu.roll(x, 1, axis=1), 0.0)
    right = jnp.where(col != W - 1, pltpu.roll(x, HW - 1, axis=1), 0.0)  # roll by -1
    t = left + 2.0 * x + right

    # Vertical [1, 2, 1] pass: neighbors are +-W along the flattened lane axis;
    # mask the first / last image row.
    up = jnp.where(idx >= W, pltpu.roll(t, W, axis=1), 0.0)
    down = jnp.where(idx < HW - W, pltpu.roll(t, HW - W, axis=1), 0.0)   # roll by -W
    out = (up + 2.0 * t + down) * (1.0 / 16.0)

    o_ref[...] = out.astype(o_ref.dtype)


def _vmem_capacity_bytes():
    """Physical VMEM per core (v5e/v6e: 128 MiB, v7x: 64 MiB); conservative fallback."""
    try:
        return int(pltpu.get_tpu_info().vmem_capacity_bytes)
    except Exception:
        return 64 * 1024 * 1024


def _choose_plane_block(P, HW, itemsize, budget):
    """Planes per grid step: fits the VMEM budget, sublane-aligned (multiple of 8 or
    equal to P), and capped so the grid keeps >= ~8 steps when P is large."""
    per_plane = (
        4 * HW * itemsize   # input + output blocks, double-buffered
        + 6 * HW * 4        # in-kernel f32 values (x, rolls, t, out) headroom
    )
    b = max(1, budget // max(per_plane, 1))
    b = min(b, max(8, pl.cdiv(P, 8)))   # keep several grid steps for megacore/overlap
    if b >= P:
        return P
    if b >= 8:
        b = (b // 8) * 8                # sublane-aligned block
    return max(1, b)


def blur3x3(x, *, plane_block=None):
    """Apply the Blur3x3 filter. x: (N, C, H, W) -> (N, C, H, W), same dtype."""
    N, C, H, W = x.shape
    P = N * C
    HW = H * W
    xf = x.reshape(P, HW)               # free reshape (contiguous dims merge only)

    itemsize = jnp.dtype(x.dtype).itemsize
    cap = _vmem_capacity_bytes()
    budget = (cap * 3) // 8             # ~48 MiB on v5e/v6e, ~24 MiB on v7x
    vmem_limit = (cap * 3) // 4         # ~96 MiB on v5e/v6e, ~48 MiB on v7x

    B = plane_block if plane_block is not None else _choose_plane_block(
        P, HW, itemsize, budget)
    grid = (pl.cdiv(P, B),)             # ragged tail handled by Pallas (no tail drop)

    out = pl.pallas_call(
        functools.partial(_blur3x3_kernel, H=H, W=W),
        out_shape=jax.ShapeDtypeStruct((P, HW), x.dtype),
        grid=grid,
        in_specs=[pl.BlockSpec((B, HW), lambda i: (i, 0))],
        out_specs=pl.BlockSpec((B, HW), lambda i: (i, 0)),
        compiler_params=pltpu.CompilerParams(
            dimension_semantics=("parallel",),
            vmem_limit_bytes=int(vmem_limit),
        ),
        cost_estimate=pl.CostEstimate(
            flops=7 * P * HW,
            transcendentals=0,
            bytes_accessed=2 * P * HW * itemsize,
        ),
    )(xf)

    return out.reshape(N, C, H, W)


def _reference_blur3x3(x):
    """Pure-JAX reference matching the PyTorch module exactly."""
    N, C, H, W = x.shape
    f1 = jnp.array([1.0, 2.0, 1.0], dtype=jnp.float32)
    filt = f1[None, :] * f1[:, None]
    filt = filt / filt.sum()                      # (3, 3)
    kern = jnp.broadcast_to(filt, (C, 1, 3, 3))   # OIHW, groups=C depthwise
    return jax.lax.conv_general_dilated(
        x.astype(jnp.float32), kern,
        window_strides=(1, 1),
        padding=((1, 1), (1, 1)),
        dimension_numbers=("NCHW", "OIHW", "NCHW"),
        feature_group_count=C,
    ).astype(x.dtype)


if __name__ == "__main__":
    key = jax.random.PRNGKey(0)
    x = jax.random.normal(key, (2, 4, 16, 16), dtype=jnp.float32)

    y = blur3x3(x)
    y = jax.block_until_ready(y)

    y_ref = _reference_blur3x3(x)
    assert y.shape == x.shape and y.dtype == x.dtype
    assert jnp.allclose(y, y_ref, atol=1e-5, rtol=1e-5), "mismatch vs reference"

    print("KERNEL_OK")
</pallas_src>

<mosaic_0001>
module attributes {stable_mosaic.version = 11 : i64} {
  func.func @_blur3x3_kernel(%arg0: i32, %arg1: memref<8x256xf32, #tpu.memory_space<vmem>>, %arg2: memref<8x256xf32, #tpu.memory_space<vmem>>) attributes {dimension_semantics = [#tpu.dimension_semantics<parallel>], iteration_bounds = array<i64: 1>, scalar_prefetch = 0 : i64, scratch_operands = 0 : i64, tpu.core_type = #tpu.core_type<tc>, window_params = [{transform_indices = @transform_0, window_bounds = array<i64: 8, 256>}, {transform_indices = @transform_1, window_bounds = array<i64: 8, 256>}]} {
    %c0 = arith.constant 0 : index
    %c0_0 = arith.constant 0 : index
    %0 = vector.load %arg1[%c0, %c0_0] : memref<8x256xf32, #tpu.memory_space<vmem>>, vector<8x256xf32>
    %1 = tpu.iota {dimensions = array<i32: 1>} : vector<8x256xi32>
    %c16_i32 = arith.constant 16 : i32
    %c0_i32 = arith.constant 0 : i32
    %2 = arith.cmpi eq, %c16_i32, %c0_i32 : i32
    %c1_i32 = arith.constant 1 : i32
    %3 = arith.select %2, %c1_i32, %c16_i32 : i32
    %4 = vector.broadcast %3 : i32 to vector<8x256xi32>
    %5 = arith.remsi %1, %4 : vector<8x256xi32>
    %c0_i32_1 = arith.constant 0 : i32
    %6 = vector.broadcast %c0_i32_1 : i32 to vector<8x256xi32>
    %7 = arith.cmpi ne, %5, %6 : vector<8x256xi32>
    %c0_i32_2 = arith.constant 0 : i32
    %8 = vector.broadcast %c0_i32_2 : i32 to vector<8x256xi32>
    %9 = arith.cmpi slt, %5, %8 : vector<8x256xi32>
    %c0_i32_3 = arith.constant 0 : i32
    %10 = arith.cmpi slt, %3, %c0_i32_3 : i32
    %11 = vector.broadcast %10 : i1 to vector<8x256xi1>
    %12 = vector.broadcast %11 : vector<8x256xi1> to vector<8x256xi1>
    %13 = arith.xori %9, %12 : vector<8x256xi1>
    %14 = arith.andi %13, %7 : vector<8x256xi1>
    %15 = vector.broadcast %3 : i32 to vector<8x256xi32>
    %16 = arith.addi %5, %15 : vector<8x256xi32>
    %17 = arith.select %14, %16, %5 : vector<8x256xi1>, vector<8x256xi32>
    %c0_i32_4 = arith.constant 0 : i32
    %18 = vector.broadcast %c0_i32_4 : i32 to vector<8x256xi32>
    %19 = arith.cmpi ne, %17, %18 : vector<8x256xi32>
    %c1_i32_5 = arith.constant 1 : i32
    %20 = tpu.dynamic_rotate %0 by %c1_i32_5 dim 1 : vector<8x256xf32>, i32 -> vector<8x256xf32>
    %cst = arith.constant 0.000000e+00 : f32
    %21 = vector.broadcast %cst : f32 to vector<8x256xf32>
    %22 = arith.select %19, %20, %21 : vector<8x256xi1>, vector<8x256xf32>
    %c15_i32 = arith.constant 15 : i32
    %23 = vector.broadcast %c15_i32 : i32 to vector<8x256xi32>
    %24 = arith.cmpi ne, %17, %23 : vector<8x256xi32>
    %c255_i32 = arith.constant 255 : i32
    %25 = tpu.dynamic_rotate %0 by %c255_i32 dim 1 : vector<8x256xf32>, i32 -> vector<8x256xf32>
    %cst_6 = arith.constant 0.000000e+00 : f32
    %26 = vector.broadcast %cst_6 : f32 to vector<8x256xf32>
    %27 = arith.select %24, %25, %26 : vector<8x256xi1>, vector<8x256xf32>
    %cst_7 = arith.constant 2.000000e+00 : f32
    %28 = vector.broadcast %cst_7 : f32 to vector<8x256xf32>
    %29 = arith.mulf %28, %0 : vector<8x256xf32>
    %30 = arith.addf %22, %29 : vector<8x256xf32>
    %31 = arith.addf %30, %27 : vector<8x256xf32>
    %c16_i32_8 = arith.constant 16 : i32
    %32 = vector.broadcast %c16_i32_8 : i32 to vector<8x256xi32>
    %33 = arith.cmpi sge, %1, %32 : vector<8x256xi32>
    %c16_i32_9 = arith.constant 16 : i32
    %34 = tpu.dynamic_rotate %31 by %c16_i32_9 dim 1 : vector<8x256xf32>, i32 -> vector<8x256xf32>
    %cst_10 = arith.constant 0.000000e+00 : f32
    %35 = vector.broadcast %cst_10 : f32 to vector<8x256xf32>
    %36 = arith.select %33, %34, %35 : vector<8x256xi1>, vector<8x256xf32>
    %c240_i32 = arith.constant 240 : i32
    %37 = vector.broadcast %c240_i32 : i32 to vector<8x256xi32>
    %38 = arith.cmpi slt, %1, %37 : vector<8x256xi32>
    %c240_i32_11 = arith.constant 240 : i32
    %39 = tpu.dynamic_rotate %31 by %c240_i32_11 dim 1 : vector<8x256xf32>, i32 -> vector<8x256xf32>
    %cst_12 = arith.constant 0.000000e+00 : f32
    %40 = vector.broadcast %cst_12 : f32 to vector<8x256xf32>
    %41 = arith.select %38, %39, %40 : vector<8x256xi1>, vector<8x256xf32>
    %cst_13 = arith.constant 2.000000e+00 : f32
    %42 = vector.broadcast %cst_13 : f32 to vector<8x256xf32>
    %43 = arith.mulf %42, %31 : vector<8x256xf32>
    %44 = arith.addf %36, %43 : vector<8x256xf32>
    %45 = arith.addf %44, %41 : vector<8x256xf32>
    %cst_14 = arith.constant 6.250000e-02 : f32
    %46 = vector.broadcast %cst_14 : f32 to vector<8x256xf32>
    %47 = arith.mulf %45, %46 : vector<8x256xf32>
    %c0_15 = arith.constant 0 : index
    %c0_16 = arith.constant 0 : index
    %48 = vector.load %arg2[%c0_15, %c0_16] : memref<8x256xf32, #tpu.memory_space<vmem>>, vector<8x256xf32>
    tpu.vector_store %arg2[%c0_15, %c0_16], %47 {strides = array<i32>} : memref<8x256xf32, #tpu.memory_space<vmem>>, vector<8x256xf32>,
    return
  }
  func.func @transform_0(%arg0: i32) -> (i32, i32) {
    %c0_i32 = arith.constant 0 : i32
    %c0_i32_0 = arith.constant 0 : i32
    return %arg0, %c0_i32 : i32, i32
  }
  func.func @transform_1(%arg0: i32) -> (i32, i32) {
    %c0_i32 = arith.constant 0 : i32
    %c0_i32_0 = arith.constant 0 : i32
    return %arg0, %c0_i32 : i32, i32
  }
}

</mosaic_0001>

<llo_original>
// kernel: tpu_custom_call.1
$region0: #{tpu_custom_call.1}
  #allocation0 [shape = 'u32[]', space=smem, size = 0x4, offset = 0x4, fixed_abs, tag = 'smem constant byte address 0x4 - core index']
  #allocation1 [shape = 'u32[144,128]{1,0:T(1,128)}', space=vmem, size = 0x12000, scoped, tag = 'internal scratch']
  %s0 = inlined_call_operand.hbm [shape: f32[8,256], index: 0, kind: input, shape index: {}]
  %s1 = inlined_call_operand.hbm [shape: f32[8,256], index: 1, kind: output, shape index: {}]
  %s2 = sld [smem:[#allocation0]]
  $region18: #{tpu_custom_call.1} parent=0
    _
  %s4 = ssub.s32 1, %s2
  %s5 = scalar_select 0, %s4, %s2
  $region1: #{tpu_custom_call.1} parent=0
    #allocation2 [shape = 'u8[8192]{0}', space=vmem, size = 0x2000, scoped, tag = 'input window, operand 0, single buffered']
    #allocation3 [shape = 's32[1]{0}', space=sflag, size = 0x4, scoped, tag = 'scoped memory for tpu_custom_call.1']
    #allocation4 [shape = 's32[1]{0}', space=sflag, size = 0x4, scoped, tag = 'scoped memory for tpu_custom_call.1']
    #allocation5 [shape = 'u8[8192]{0}', space=vmem, size = 0x2000, scoped, tag = 'output window, operand 0, single buffered']
    %6 = vsyncpa [#allocation3], 0
    %7 = vsyncpa [#allocation4], 0
    // Predicated region
    $region2: #{tpu_custom_call.1} parent=1 // pred_check
      _
    $region3: #{tpu_custom_call.1} parent=1 // pred_check_branch
      %9 = sbr.rel (0) target = $region5
    $region4: #{tpu_custom_call.1} parent=1 // pred_region
      %s11 = ssub.s32 256, 256
      %12 = vsyncadd [#allocation3], %s11
      %s14 = sshll.u32 [#allocation2], 4
      %s15 = int_to_ptr.vmem [resolvable:$true] %s14
      %17 = dma.hbm_to_vmem [thread:$0]  %s0, 256, %s15, [#allocation3]
    $region5: #{tpu_custom_call.1} parent=1 // pred_fallthru
      _
    // Predicated region
    $region6: #{tpu_custom_call.1} parent=1 // pred_check
      _
    $region7: #{tpu_custom_call.1} parent=1 // pred_check_branch
      %19 = sbr.rel (0) target = $region9
    $region8: #{tpu_custom_call.1} parent=1 // pred_region
      %20 = dma.done [#allocation3], 256
    $region9: #{tpu_custom_call.1} parent=1 // pred_fallthru
      _
    %v21 = vld [vmem:[#allocation2] sm:$0xff]
    %v22 = vld [vmem:[#allocation2 + $0x8] sm:$0xff]
    %v23 = vlaneseq
    %v24 = vand.u32 %v23, 127
    %v25 = vadd.s32 %v24, 128
    %vm26 = vcmp.lt.s32.totalorder %v24, 0
    %v27 = vsub.s32 0, %v24
    %v28 = vsel %vm26, %v27, %v24
    %v29 = vshrl.u32 %v28, 4
    %v30 = vand.u32 %v28, 15
    %v31 = vsub.s32 0, %v30
    %v32 = vsel %vm26, %v31, %v30
    %vm33 = vcmp.lt.s32.totalorder %v25, 0
    %v34 = vsub.s32 0, %v25
    %v35 = vsel %vm33, %v34, %v25
    %v36 = vshrl.u32 %v35, 4
    %v37 = vand.u32 %v35, 15
    %v38 = vsub.s32 0, %v37
    %v39 = vsel %vm33, %v38, %v37
    %vm40 = vcmp.ne.s32.totalorder %v32, 0
    %vm41 = vcmp.ne.s32.totalorder %v39, 0
    %vm42 = vcmp.lt.s32.totalorder %v32, 0
    %vm43 = vcmp.lt.s32.totalorder %v39, 0
    %vm44 = vmand %vm42, %vm40
    %vm45 = vmand %vm43, %vm41
    %v46 = vadd.s32 %v32, 16
    %v47 = vadd.s32 %v39, 16
    %v48 = vsel %vm44, %v46, %v32
    %v49 = vsel %vm45, %v47, %v39
    %vm50 = vcmp.ne.s32.totalorder %v48, 0
    %vm51 = vcmp.ne.s32.totalorder %v49, 0
    %52 = vrot.lane.b32.xlu0 %v21, 1
    %v53 = vpop.permute.xlu0 %52
    %54 = vrot.lane.b32.xlu0 %v22, 1
    %v55 = vpop.permute.xlu0 %54
    %vm56 = vcmp.lt.s32.totalorder %v24, 1
    %v57 = vsel %vm56, %v53, %v55
    %v58 = vsel %vm56, %v55, %v53
    %v59 = vsel %vm50, %v58, 0.0
    %v60 = vsel %vm51, %v57, 0.0
    %vm61 = vcmp.ne.s32.totalorder %v48, 15
    %vm62 = vcmp.ne.s32.totalorder %v49, 15
    %63 = vrot.lane.b32.xlu0 %v21, 127
    %v64 = vpop.permute.xlu0 %63
    %65 = vrot.lane.b32.xlu0 %v22, 127
    %v66 = vpop.permute.xlu0 %65
    %vm67 = vcmp.lt.s32.totalorder %v24, 127
    %v68 = vsel %vm67, %v64, %v66
    %v69 = vsel %vm67, %v66, %v64
    %v70 = vsel %vm61, %v68, 0.0
    %v71 = vsel %vm62, %v69, 0.0
    %v72 = vmul.f32 %v21, 2.0
    %v73 = vmul.f32 %v22, 2.0
    %v74 = vadd.f32 %v59, %v72
    %v75 = vadd.f32 %v60, %v73
    %v76 = vadd.f32 %v74, %v70
    %v77 = vadd.f32 %v75, %v71
    %vm78 = vcmp.ge.s32.totalorder %v24, 16
    %vm79 = vcmp.ge.s32.totalorder %v25, 16
    %80 = vrot.lane.b32.xlu0 %v76, 16
    %v81 = vpop.permute.xlu0 %80
    %82 = vrot.lane.b32.xlu0 %v77, 16
    %v83 = vpop.permute.xlu0 %82
    %vm84 = vcmp.lt.s32.totalorder %v24, 16
    %v85 = vsel %vm84, %v81, %v83
    %v86 = vsel %vm84, %v83, %v81
    %v87 = vsel %vm78, %v86, 0.0
    %v88 = vsel %vm79, %v85, 0.0
    %vm89 = vcmp.lt.s32.totalorder %v24, 240
    %vm90 = vcmp.lt.s32.totalorder %v25, 240
    %91 = vrot.lane.b32.xlu0 %v76, 112
    %v92 = vpop.permute.xlu0 %91
    %93 = vrot.lane.b32.xlu0 %v77, 112
    %v94 = vpop.permute.xlu0 %93
    %vm95 = vcmp.lt.s32.totalorder %v24, 112
    %v96 = vsel %vm95, %v92, %v94
    %v97 = vsel %vm95, %v94, %v92
    %v98 = vsel %vm89, %v96, 0.0
    %v99 = vsel %vm90, %v97, 0.0
    %v100 = vmul.f32 %v76, 2.0
    %v101 = vmul.f32 %v77, 2.0
    %v102 = vadd.f32 %v87, %v100
    %v103 = vadd.f32 %v88, %v101
    %v104 = vadd.f32 %v102, %v98
    %v105 = vadd.f32 %v103, %v99
    %v106 = vmul.f32 %v104, 0.0625
    %v107 = vmul.f32 %v105, 0.0625
    %108 = vst [vmem:[#allocation5] sm:$0xff] %v106
    %109 = vst [vmem:[#allocation5 + $0x8] sm:$0xff] %v107
    // Predicated region
    $region10: #{tpu_custom_call.1} parent=1 // pred_check
      _
    $region11: #{tpu_custom_call.1} parent=1 // pred_check_branch
      %111 = sbr.rel (0) target = $region13
    $region12: #{tpu_custom_call.1} parent=1 // pred_region
      %s113 = ssub.s32 256, 256
      %114 = vsyncadd [#allocation4], %s113
      %s116 = sshll.u32 [#allocation5], 4
      %s117 = int_to_ptr.vmem [resolvable:$true] %s116
      %119 = dma.vmem_to_hbm [thread:$0]  %s117, 256, %s1, [#allocation4]
    $region13: #{tpu_custom_call.1} parent=1 // pred_fallthru
      _
    // Predicated region
    $region14: #{tpu_custom_call.1} parent=1 // pred_check
      _
    $region15: #{tpu_custom_call.1} parent=1 // pred_check_branch
      %121 = sbr.rel (0) target = $region17
    $region16: #{tpu_custom_call.1} parent=1 // pred_region
      %122 = dma.done [#allocation4], 256
    $region17: #{tpu_custom_call.1} parent=1 // pred_fallthru
      _
    %123 = vsyncpa [#allocation3], 1
    %124 = vsyncpa [#allocation4], 1

</llo_original>
